<compile_context>
chip_gen: v7x
topology: tpu7x:2x2x1
jax: 0.10.0
libtpu: 0.0.40
codegen_flags: <defaults>
</compile_context>

<pallas_src>
import jax
import jax.numpy as jnp
from jax import lax
from jax.experimental import pallas as pl
from jax.experimental.pallas import tpu as pltpu

K = 4        # kernel size
STRIDE = 2   # stride
PAD = 1      # padding

# For output-row parity ph (= oh % 2) and row tap dh in {0, 1}:
#   contributing kernel row  = _KTAP[ph][dh]
#   contributing padded row  = (oh // 2) + ph + dh      (1-pixel border padding)
# The same table applies to columns by symmetry.
_KTAP = ((3, 1), (2, 0))


def _deconv_phase_kernel(x_ref, w_ref, b_ref, o_ref):
    """One (batch, spatial-tile) grid step; all 4 parity phases, one MXU matmul each.

    x_ref : (1, 4, 4*Cin, TL)  f32 VMEM — per-phase, tap-stacked input slabs.
    w_ref : (4, Cout_p, 4*Cin) f32 VMEM — per-phase fused sub-kernel matrices.
    b_ref : (Cout_p, 1)        f32 VMEM
    o_ref : (1, 4, Cout_p, TL) f32 VMEM — per-phase, lane-dense output slabs.
    """
    bias = b_ref[...]                                    # (Cout_p, 1)
    for p in range(4):                                   # static unroll: 4 phases
        o_ref[0, p] = (jnp.dot(w_ref[p], x_ref[0, p],
                               preferred_element_type=jnp.float32)
                       + bias).astype(o_ref.dtype)


def _pick_tile_lanes(hw, target=2048):
    """Largest multiple-of-128 divisor of hw not exceeding `target`, else hw."""
    if hw <= target:
        return hw
    t = (target // 128) * 128
    while t >= 128:
        if hw % t == 0:
            return t
        t -= 128
    return hw


def upsample_conv_transpose(x, weight, bias, *, tile_lanes=None):
    """ConvTranspose2d(Cin, Cout=Cin//2, k=4, s=2, p=1), PyTorch semantics.

    x:      (N, Cin, H, W)    float32
    weight: (Cin, Cout, K, K) float32  (PyTorch ConvTranspose2d weight layout)
    bias:   (Cout,)           float32
    returns (N, Cout, 2H, 2W) float32
    """
    n, cin, h, w = x.shape
    cout = weight.shape[1]
    oh, ow = h * STRIDE, w * STRIDE
    hw = h * w
    cin4 = 4 * cin                       # fused contraction dim (4 taps x Cin)
    cout_p = ((cout + 7) // 8) * 8       # pad Cout to a sublane multiple

    tl = tile_lanes if tile_lanes is not None else _pick_tile_lanes(hw)
    assert hw % tl == 0 and (tl % 128 == 0 or tl == hw), (hw, tl)
    n_tiles = hw // tl

    # --- glue: per-phase tap-stacked input slabs (offset-0, lane-dense) ----------
    # Phase (ph, pw), tap (dh, dw) reads padded rows [ph+dh, ph+dh+H) and padded
    # cols [pw+dw, pw+dw+W); the 4 taps are concatenated along the sublane axis.
    xpad = jnp.pad(x, ((0, 0), (0, 0), (1, 1), (1, 1)))          # (N,Cin,H+2,W+2)
    slabs = []
    for ph in range(2):
        for pw in range(2):
            taps = []
            for dh in range(2):
                for dw in range(2):
                    win = xpad[:, :, ph + dh:ph + dh + h, pw + dw:pw + dw + w]
                    taps.append(win.reshape(n, cin, hw))
            slabs.append(jnp.concatenate(taps, axis=1))          # (N, 4*Cin, H*W)
    xstk = jnp.stack(slabs, axis=1)                              # (N,4,4*Cin,H*W)

    # --- glue: per-phase fused weight matrices (Cout_p, 4*Cin) and padded bias ---
    wcat = jnp.zeros((4, cout_p, cin4), jnp.float32)
    for ph in range(2):
        for pw in range(2):
            p = ph * 2 + pw
            for dh in range(2):
                for dw in range(2):
                    t = dh * 2 + dw
                    sub = jnp.transpose(
                        weight[:, :, _KTAP[ph][dh], _KTAP[pw][dw]], (1, 0))  # (Cout,Cin)
                    wcat = wcat.at[p, :cout, t * cin:(t + 1) * cin].set(sub)
    bias_p = jnp.zeros((cout_p, 1), jnp.float32).at[:cout, 0].set(bias)

    flops = 2 * n * 4 * cout_p * cin4 * hw
    bytes_accessed = 4 * (xstk.size + wcat.size + bias_p.size + n * 4 * cout_p * hw)

    # VMEM budget: double-buffered in/out blocks + resident weights + headroom.
    per_step = 4 * (4 * cin4 * tl + 4 * cout_p * tl)             # in + out, f32
    resident = 4 * (wcat.size + bias_p.size)
    vmem_limit = int(min(max(4 * per_step + resident, 32 << 20), 100 << 20))

    out_k = pl.pallas_call(
        _deconv_phase_kernel,
        out_shape=jax.ShapeDtypeStruct((n, 4, cout_p, hw), x.dtype),
        grid=(n, n_tiles),
        in_specs=[
            pl.BlockSpec((1, 4, cin4, tl), lambda i, t: (i, 0, 0, t)),   # input slabs
            pl.BlockSpec((4, cout_p, cin4), lambda i, t: (0, 0, 0)),     # fused weights
            pl.BlockSpec((cout_p, 1), lambda i, t: (0, 0)),              # bias
        ],
        out_specs=pl.BlockSpec((1, 4, cout_p, tl), lambda i, t: (i, 0, 0, t)),
        compiler_params=pltpu.CompilerParams(
            dimension_semantics=("parallel", "parallel"),
            vmem_limit_bytes=vmem_limit),
        cost_estimate=pl.CostEstimate(flops=flops, transcendentals=0,
                                      bytes_accessed=bytes_accessed),
    )(xstk, wcat, bias_p)

    # --- glue: interleave the 4 parity phases back into NCHW ---------------------
    y = out_k[:, :, :cout, :].reshape(n, 2, 2, cout, h, w)   # (n, ph, pw, co, r, c)
    y = jnp.transpose(y, (0, 3, 4, 1, 5, 2))                 # (n, co, r, ph, c, pw)
    return y.reshape(n, cout, oh, ow)


def _reference(x, weight, bias):
    """XLA reference for ConvTranspose2d(k=4, s=2, p=1) with PyTorch semantics."""
    w_corr = jnp.transpose(jnp.flip(weight, axis=(2, 3)), (1, 0, 2, 3))  # (Cout,Cin,K,K)
    y = lax.conv_general_dilated(
        x, w_corr,
        window_strides=(1, 1),
        padding=[(K - 1 - PAD, K - 1 - PAD), (K - 1 - PAD, K - 1 - PAD)],
        lhs_dilation=(STRIDE, STRIDE),
        rhs_dilation=(1, 1),
        dimension_numbers=("NCHW", "OIHW", "NCHW"),
    )
    return y + bias[None, :, None, None]


if __name__ == "__main__":
    # Small shapes consistent with the module: batch=2, channels=4, spatial=16.
    N, C, H, W = 2, 4, 16, 16
    COUT = C // 2

    key = jax.random.PRNGKey(0)
    kx, kw_, kb = jax.random.split(key, 3)

    x = jax.random.normal(kx, (N, C, H, W), dtype=jnp.float32)
    # PyTorch ConvTranspose2d weight layout: (Cin, Cout, K, K).
    fan = C * K * K
    bound = 1.0 / (fan ** 0.5)
    weight = jax.random.uniform(kw_, (C, COUT, K, K), jnp.float32, -bound, bound)
    bias = jax.random.uniform(kb, (COUT,), jnp.float32, -bound, bound)

    ref = _reference(x, weight, bias)

    out = upsample_conv_transpose(x, weight, bias)
    out = jax.block_until_ready(out)
    assert out.shape == (N, COUT, 2 * H, 2 * W), out.shape
    assert jnp.allclose(out, ref, atol=1e-5, rtol=1e-5), "mismatch vs XLA reference"

    # Also exercise the multi-tile spatial grid path (2 lane tiles of 128).
    out_tiled = upsample_conv_transpose(x, weight, bias, tile_lanes=128)
    out_tiled = jax.block_until_ready(out_tiled)
    assert jnp.allclose(out_tiled, ref, atol=1e-5, rtol=1e-5), "tiled mismatch"

    print("KERNEL_OK")
</pallas_src>

<mosaic_0001>
module attributes {stable_mosaic.version = 11 : i64} {
  func.func @_deconv_phase_kernel(%arg0: i32, %arg1: i32, %arg2: memref<1x4x16x256xf32, #tpu.memory_space<vmem>>, %arg3: memref<4x8x16xf32, #tpu.memory_space<vmem>>, %arg4: memref<8x1xf32, #tpu.memory_space<vmem>>, %arg5: memref<1x4x8x256xf32, #tpu.memory_space<vmem>>) attributes {dimension_semantics = [#tpu.dimension_semantics<parallel>, #tpu.dimension_semantics<parallel>], iteration_bounds = array<i64: 2, 1>, scalar_prefetch = 0 : i64, scratch_operands = 0 : i64, tpu.core_type = #tpu.core_type<tc>, window_params = [{transform_indices = @transform_0, window_bounds = array<i64: 1, 4, 16, 256>}, {pipeline_mode = #tpu.pipeline_mode<synchronous>, transform_indices = @transform_1, window_bounds = array<i64: 4, 8, 16>}, {pipeline_mode = #tpu.pipeline_mode<synchronous>, transform_indices = @transform_2, window_bounds = array<i64: 8, 1>}, {transform_indices = @transform_3, window_bounds = array<i64: 1, 4, 8, 256>}]} {
    %c0 = arith.constant 0 : index
    %c0_0 = arith.constant 0 : index
    %0 = vector.load %arg4[%c0, %c0_0] : memref<8x1xf32, #tpu.memory_space<vmem>>, vector<8x1xf32>
    %c0_1 = arith.constant 0 : index
    %c0_2 = arith.constant 0 : index
    %c0_3 = arith.constant 0 : index
    %1 = vector.load %arg3[%c0_1, %c0_2, %c0_3] : memref<4x8x16xf32, #tpu.memory_space<vmem>>, vector<1x8x16xf32>
    %2 = vector.shape_cast %1 : vector<1x8x16xf32> to vector<8x16xf32>
    %c0_4 = arith.constant 0 : index
    %c0_5 = arith.constant 0 : index
    %c0_6 = arith.constant 0 : index
    %c0_7 = arith.constant 0 : index
    %3 = vector.load %arg2[%c0_4, %c0_5, %c0_6, %c0_7] : memref<1x4x16x256xf32, #tpu.memory_space<vmem>>, vector<1x1x16x256xf32>
    %4 = vector.shape_cast %3 : vector<1x1x16x256xf32> to vector<16x256xf32>
    %cst = arith.constant dense<0.000000e+00> : vector<8x256xf32>
    %5 = tpu.matmul %2, %4, %cst {dimension_numbers = #tpu.dot_dimension_numbers<[1], [0], [0], [1], [0, 0, 1, 1], [], []>} : vector<8x16xf32>, vector<16x256xf32>, vector<8x256xf32> -> vector<8x256xf32>
    %6 = vector.broadcast %0 : vector<8x1xf32> to vector<8x256xf32>
    %7 = arith.addf %5, %6 : vector<8x256xf32>
    %c0_8 = arith.constant 0 : index
    %c0_9 = arith.constant 0 : index
    %c0_10 = arith.constant 0 : index
    %c0_11 = arith.constant 0 : index
    %8 = vector.load %arg5[%c0_8, %c0_9, %c0_10, %c0_11] : memref<1x4x8x256xf32, #tpu.memory_space<vmem>>, vector<1x1x8x256xf32>
    %9 = vector.shape_cast %8 : vector<1x1x8x256xf32> to vector<8x256xf32>
    %10 = vector.shape_cast %7 : vector<8x256xf32> to vector<1x1x8x256xf32>
    tpu.vector_store %arg5[%c0_8, %c0_9, %c0_10, %c0_11], %10 {strides = array<i32>} : memref<1x4x8x256xf32, #tpu.memory_space<vmem>>, vector<1x1x8x256xf32>,
    %c1 = arith.constant 1 : index
    %c0_12 = arith.constant 0 : index
    %c0_13 = arith.constant 0 : index
    %11 = vector.load %arg3[%c1, %c0_12, %c0_13] : memref<4x8x16xf32, #tpu.memory_space<vmem>>, vector<1x8x16xf32>
    %12 = vector.shape_cast %11 : vector<1x8x16xf32> to vector<8x16xf32>
    %c0_14 = arith.constant 0 : index
    %c1_15 = arith.constant 1 : index
    %c0_16 = arith.constant 0 : index
    %c0_17 = arith.constant 0 : index
    %13 = vector.load %arg2[%c0_14, %c1_15, %c0_16, %c0_17] : memref<1x4x16x256xf32, #tpu.memory_space<vmem>>, vector<1x1x16x256xf32>
    %14 = vector.shape_cast %13 : vector<1x1x16x256xf32> to vector<16x256xf32>
    %cst_18 = arith.constant dense<0.000000e+00> : vector<8x256xf32>
    %15 = tpu.matmul %12, %14, %cst_18 {dimension_numbers = #tpu.dot_dimension_numbers<[1], [0], [0], [1], [0, 0, 1, 1], [], []>} : vector<8x16xf32>, vector<16x256xf32>, vector<8x256xf32> -> vector<8x256xf32>
    %16 = vector.broadcast %0 : vector<8x1xf32> to vector<8x256xf32>
    %17 = arith.addf %15, %16 : vector<8x256xf32>
    %c0_19 = arith.constant 0 : index
    %c1_20 = arith.constant 1 : index
    %c0_21 = arith.constant 0 : index
    %c0_22 = arith.constant 0 : index
    %18 = vector.load %arg5[%c0_19, %c1_20, %c0_21, %c0_22] : memref<1x4x8x256xf32, #tpu.memory_space<vmem>>, vector<1x1x8x256xf32>
    %19 = vector.shape_cast %18 : vector<1x1x8x256xf32> to vector<8x256xf32>
    %20 = vector.shape_cast %17 : vector<8x256xf32> to vector<1x1x8x256xf32>
    tpu.vector_store %arg5[%c0_19, %c1_20, %c0_21, %c0_22], %20 {strides = array<i32>} : memref<1x4x8x256xf32, #tpu.memory_space<vmem>>, vector<1x1x8x256xf32>,
    %c2 = arith.constant 2 : index
    %c0_23 = arith.constant 0 : index
    %c0_24 = arith.constant 0 : index
    %21 = vector.load %arg3[%c2, %c0_23, %c0_24] : memref<4x8x16xf32, #tpu.memory_space<vmem>>, vector<1x8x16xf32>
    %22 = vector.shape_cast %21 : vector<1x8x16xf32> to vector<8x16xf32>
    %c0_25 = arith.constant 0 : index
    %c2_26 = arith.constant 2 : index
    %c0_27 = arith.constant 0 : index
    %c0_28 = arith.constant 0 : index
    %23 = vector.load %arg2[%c0_25, %c2_26, %c0_27, %c0_28] : memref<1x4x16x256xf32, #tpu.memory_space<vmem>>, vector<1x1x16x256xf32>
    %24 = vector.shape_cast %23 : vector<1x1x16x256xf32> to vector<16x256xf32>
    %cst_29 = arith.constant dense<0.000000e+00> : vector<8x256xf32>
    %25 = tpu.matmul %22, %24, %cst_29 {dimension_numbers = #tpu.dot_dimension_numbers<[1], [0], [0], [1], [0, 0, 1, 1], [], []>} : vector<8x16xf32>, vector<16x256xf32>, vector<8x256xf32> -> vector<8x256xf32>
    %26 = vector.broadcast %0 : vector<8x1xf32> to vector<8x256xf32>
    %27 = arith.addf %25, %26 : vector<8x256xf32>
    %c0_30 = arith.constant 0 : index
    %c2_31 = arith.constant 2 : index
    %c0_32 = arith.constant 0 : index
    %c0_33 = arith.constant 0 : index
    %28 = vector.load %arg5[%c0_30, %c2_31, %c0_32, %c0_33] : memref<1x4x8x256xf32, #tpu.memory_space<vmem>>, vector<1x1x8x256xf32>
    %29 = vector.shape_cast %28 : vector<1x1x8x256xf32> to vector<8x256xf32>
    %30 = vector.shape_cast %27 : vector<8x256xf32> to vector<1x1x8x256xf32>
    tpu.vector_store %arg5[%c0_30, %c2_31, %c0_32, %c0_33], %30 {strides = array<i32>} : memref<1x4x8x256xf32, #tpu.memory_space<vmem>>, vector<1x1x8x256xf32>,
    %c3 = arith.constant 3 : index
    %c0_34 = arith.constant 0 : index
    %c0_35 = arith.constant 0 : index
    %31 = vector.load %arg3[%c3, %c0_34, %c0_35] : memref<4x8x16xf32, #tpu.memory_space<vmem>>, vector<1x8x16xf32>
    %32 = vector.shape_cast %31 : vector<1x8x16xf32> to vector<8x16xf32>
    %c0_36 = arith.constant 0 : index
    %c3_37 = arith.constant 3 : index
    %c0_38 = arith.constant 0 : index
    %c0_39 = arith.constant 0 : index
    %33 = vector.load %arg2[%c0_36, %c3_37, %c0_38, %c0_39] : memref<1x4x16x256xf32, #tpu.memory_space<vmem>>, vector<1x1x16x256xf32>
    %34 = vector.shape_cast %33 : vector<1x1x16x256xf32> to vector<16x256xf32>
    %cst_40 = arith.constant dense<0.000000e+00> : vector<8x256xf32>
    %35 = tpu.matmul %32, %34, %cst_40 {dimension_numbers = #tpu.dot_dimension_numbers<[1], [0], [0], [1], [0, 0, 1, 1], [], []>} : vector<8x16xf32>, vector<16x256xf32>, vector<8x256xf32> -> vector<8x256xf32>
    %36 = vector.broadcast %0 : vector<8x1xf32> to vector<8x256xf32>
    %37 = arith.addf %35, %36 : vector<8x256xf32>
    %c0_41 = arith.constant 0 : index
    %c3_42 = arith.constant 3 : index
    %c0_43 = arith.constant 0 : index
    %c0_44 = arith.constant 0 : index
    %38 = vector.load %arg5[%c0_41, %c3_42, %c0_43, %c0_44] : memref<1x4x8x256xf32, #tpu.memory_space<vmem>>, vector<1x1x8x256xf32>
    %39 = vector.shape_cast %38 : vector<1x1x8x256xf32> to vector<8x256xf32>
    %40 = vector.shape_cast %37 : vector<8x256xf32> to vector<1x1x8x256xf32>
    tpu.vector_store %arg5[%c0_41, %c3_42, %c0_43, %c0_44], %40 {strides = array<i32>} : memref<1x4x8x256xf32, #tpu.memory_space<vmem>>, vector<1x1x8x256xf32>,
    return
  }
  func.func @transform_0(%arg0: i32, %arg1: i32) -> (i32, i32, i32, i32) {
    %c0_i32 = arith.constant 0 : i32
    %c0_i32_0 = arith.constant 0 : i32
    %c0_i32_1 = arith.constant 0 : i32
    return %arg0, %c0_i32, %c0_i32_0, %arg1 : i32, i32, i32, i32
  }
  func.func @transform_1(%arg0: i32, %arg1: i32) -> (i32, i32, i32) {
    %c0_i32 = arith.constant 0 : i32
    %c0_i32_0 = arith.constant 0 : i32
    %c0_i32_1 = arith.constant 0 : i32
    %c0_i32_2 = arith.constant 0 : i32
    return %c0_i32, %c0_i32_0, %c0_i32_1 : i32, i32, i32
  }
  func.func @transform_2(%arg0: i32, %arg1: i32) -> (i32, i32) {
    %c0_i32 = arith.constant 0 : i32
    %c0_i32_0 = arith.constant 0 : i32
    %c0_i32_1 = arith.constant 0 : i32
    return %c0_i32, %c0_i32_0 : i32, i32
  }
  func.func @transform_3(%arg0: i32, %arg1: i32) -> (i32, i32, i32, i32) {
    %c0_i32 = arith.constant 0 : i32
    %c0_i32_0 = arith.constant 0 : i32
    %c0_i32_1 = arith.constant 0 : i32
    return %arg0, %c0_i32, %c0_i32_0, %arg1 : i32, i32, i32, i32
  }
}

</mosaic_0001>

<llo_original>
// kernel: tpu_custom_call.1
$region0: #{tpu_custom_call.1}
  #allocation0 [shape = 'u32[]', space=smem, size = 0x4, offset = 0x4, fixed_abs, tag = 'smem constant byte address 0x4 - core index']
  #allocation1 [shape = 'u32[144,128]{1,0:T(1,128)}', space=vmem, size = 0x12000, scoped, tag = 'internal scratch']
  %s0 = inlined_call_operand.hbm [shape: f32[2,4,16,256], index: 0, kind: input, shape index: {}]
  %s1 = inlined_call_operand.hbm [shape: f32[4,8,16], index: 1, kind: input, shape index: {}]
  %s2 = inlined_call_operand.vmem [shape: f32[8,1], index: 2, kind: input, shape index: {}]
  %s3 = inlined_call_operand.hbm [shape: f32[2,4,8,256], index: 3, kind: output, shape index: {}]
  %s4 = sld [smem:[#allocation0]]
  $region53: #{tpu_custom_call.1} parent=0
    _
  %s6 = ssub.s32 1, %s4
  %s7 = scalar_select 0, %s6, %s4
  $region1: #{tpu_custom_call.1} parent=0
    #allocation2 [shape = 'u8[131072]{0}', space=vmem, size = 0x20000, scoped, tag = 'input window, operand 0']
    #allocation3 [shape = 's32[2]{0}', space=sflag, size = 0x8, scoped, tag = 'scoped memory for tpu_custom_call.1']
    #allocation4 [shape = 's32[2]{0}', space=sflag, size = 0x8, scoped, tag = 'scoped memory for tpu_custom_call.1']
    #allocation5 [shape = 'u8[16384]{0}', space=vmem, size = 0x4000, scoped, tag = 'input window, operand 1, single buffered']
    #allocation6 [shape = 's32[1]{0}', space=sflag, size = 0x4, scoped, tag = 'scoped memory for tpu_custom_call.1']
    #allocation7 [shape = 'u8[65536]{0}', space=vmem, size = 0x10000, scoped, tag = 'output window, operand 0']
    %8 = vsyncpa [#allocation3], 0
    %s9 = scalar_lea.sflag [#allocation3], 1
    %10 = vsyncpa %s9, 0
    %11 = vsyncpa [#allocation6], 0
    %12 = vsyncpa [#allocation4], 0
    %s13 = scalar_lea.sflag [#allocation4], 1
    %14 = vsyncpa %s13, 0
    loop: start=0, step=1, limit=4
    $region2: #{tpu_custom_call.1} parent=1 // loop_pre_header
      _
    $region3: #{tpu_custom_call.1} parent=1 // loop_header
      %s16 = sphi 0, %s20
      %p17 = scmp.ge.s32.totalorder %s16, 4
      %s23 = sphi 0, %s35
      %s24 = sphi 0, %s31
      %s25 = sphi 0, %s23
      %s26 = sphi 0, %s24
      %s27 = sphi 0, %s25
      %s28 = sphi 0, %s26
      %s40 = sphi 0, %s42
      %s43 = sphi 0, %s40
      %s44 = sphi 0, %s43
      %s60 = sphi 0, %s44
      %s64 = sphi 0, %s64
      %s66 = sphi 0, %s64
      %s67 = sphi 0, %s66
      %s81 = sphi 0, %s67
      %s85 = sphi 0, %s85
      %s87 = sphi 0, %s85
      %s88 = sphi 0, %s87
      %s102 = sphi 0, %s88
      %s110 = sphi 0, %s112
      %s113 = sphi 0, %s110
      %s114 = sphi 0, %s113
      %s130 = sphi 0, %s114
    $region4: #{tpu_custom_call.1} parent=1 // loop_header_branch
      %19 = sbr.rel (%p17) target = $region8
    $region5: #{tpu_custom_call.1} parent=1 // loop_body
      %s21 = ssub.s32 %s16, 1
      %s22 = ssub.s32 %s16, 2
      %s29 = sadd.s32 1, %s24
      %p30 = scmp.ge.s32.totalorder %s29, 1
      %s31 = scalar_select %p30, 0, %s29
      %s32 = sadd.s32 1, %s23
      %s33 = scalar_select %p30, %s32, %s23
      %p34 = scmp.ge.s32.totalorder %s33, 2
      %s35 = scalar_select %p34, 0, %s33
      %s36 = ssub.s32 %s23, %s35
      %s37 = ssub.s32 %s24, %s31
      %s38 = sor.u32 %s36, %s37
      %p39 = scmp.eq.s32.totalorder %s38, 0
      %s41 = sadd.s32 %s40, 1
      %s42 = scalar_select %p39, %s40, %s41
      %p45 = pneg %p39
      %p46 = scmp.eq.s32.totalorder %s16, 1
      %p47 = por %p45, %p46
      %p48 = scmp.ne.s32.totalorder %s40, %s43
      %p49 = scmp.eq.s32.totalorder %s16, 0
      %p50 = por %p48, %p49
      %p51 = scmp.ne.s32.totalorder %s40, %s43
      %p52 = scmp.eq.s32.totalorder %s21, 1
      %p53 = por %p51, %p52
      %p54 = scmp.ne.s32.totalorder %s43, %s44
      %p55 = scmp.eq.s32.totalorder %s21, 0
      %p56 = por %p54, %p55
      %p57 = scmp.ne.s32.totalorder %s43, %s44
      %p58 = scmp.eq.s32.totalorder %s22, 1
      %p59 = por %p57, %p58
      %p61 = scmp.ne.s32.totalorder %s44, %s60
      %p62 = scmp.eq.s32.totalorder %s22, 0
      %p63 = por %p61, %p62
      %s65 = sadd.s32 %s64, 1
      %p68 = scmp.eq.s32.totalorder %s16, 1
      %p69 = scmp.ne.s32.totalorder %s64, %s66
      %p70 = scmp.eq.s32.totalorder %s16, 0
      %p71 = por %p69, %p70
      %p72 = scmp.ne.s32.totalorder %s64, %s66
      %p73 = scmp.eq.s32.totalorder %s21, 1
      %p74 = por %p72, %p73
      %p75 = scmp.ne.s32.totalorder %s66, %s67
      %p76 = scmp.eq.s32.totalorder %s21, 0
      %p77 = por %p75, %p76
      %p78 = scmp.ne.s32.totalorder %s66, %s67
      %p79 = scmp.eq.s32.totalorder %s22, 1
      %p80 = por %p78, %p79
      %p82 = scmp.ne.s32.totalorder %s67, %s81
      %p83 = scmp.eq.s32.totalorder %s22, 0
      %p84 = por %p82, %p83
      %s86 = sadd.s32 %s85, 1
      %p89 = scmp.eq.s32.totalorder %s16, 1
      %p90 = scmp.ne.s32.totalorder %s85, %s87
      %p91 = scmp.eq.s32.totalorder %s16, 0
      %p92 = por %p90, %p91
      %p93 = scmp.ne.s32.totalorder %s85, %s87
      %p94 = scmp.eq.s32.totalorder %s21, 1
      %p95 = por %p93, %p94
      %p96 = scmp.ne.s32.totalorder %s87, %s88
      %p97 = scmp.eq.s32.totalorder %s21, 0
      %p98 = por %p96, %p97
      %p99 = scmp.ne.s32.totalorder %s87, %s88
      %p100 = scmp.eq.s32.totalorder %s22, 1
      %p101 = por %p99, %p100
      %p103 = scmp.ne.s32.totalorder %s88, %s102
      %p104 = scmp.eq.s32.totalorder %s22, 0
      %p105 = por %p103, %p104
      %s106 = ssub.s32 %s23, %s35
      %s107 = ssub.s32 %s24, %s31
      %s108 = sor.u32 %s106, %s107
      %p109 = scmp.eq.s32.totalorder %s108, 0
      %s111 = sadd.s32 %s110, 1
      %s112 = scalar_select %p109, %s110, %s111
      %p115 = pneg %p109
      %p116 = scmp.eq.s32.totalorder %s16, 1
      %p117 = por %p115, %p116
      %p118 = scmp.ne.s32.totalorder %s110, %s113
      %p119 = scmp.eq.s32.totalorder %s16, 0
      %p120 = por %p118, %p119
      %p121 = scmp.ne.s32.totalorder %s110, %s113
      %p122 = scmp.eq.s32.totalorder %s21, 1
      %p123 = por %p121, %p122
      %p124 = scmp.ne.s32.totalorder %s113, %s114
      %p125 = scmp.eq.s32.totalorder %s21, 0
      %p126 = por %p124, %p125
      %p127 = scmp.ne.s32.totalorder %s113, %s114
      %p128 = scmp.eq.s32.totalorder %s22, 1
      %p129 = por %p127, %p128
      %p131 = scmp.ne.s32.totalorder %s114, %s130
      %p132 = scmp.eq.s32.totalorder %s22, 0
      %p133 = por %p131, %p132
      %p134 = scmp.le.s32.totalorder 1, %s16
      %p135 = scmp.lt.s32.totalorder %s16, 3
      %p136 = pnand %p134, %p135
      %p137 = pneg %p136
      // Predicated region
      $region9: #{tpu_custom_call.1} parent=5 // pred_check
        _
      $region10: #{tpu_custom_call.1} parent=5 // pred_check_branch
        %139 = sbr.rel (%p136) target = $region12
      $region11: #{tpu_custom_call.1} parent=5 // pred_region
        %s140 = ssub.s32 %s16, 1
        // Predicated region
        $region13: #{tpu_custom_call.1} parent=11 // pred_check
          %p141 = pneg %p77
        $region14: #{tpu_custom_call.1} parent=11 // pred_check_branch
          %143 = sbr.rel (%p141) target = $region16
        $region15: #{tpu_custom_call.1} parent=11 // pred_region
          %s145 = ssub.s32 512, 512
          %146 = vsyncadd [#allocation6], %s145
          %s147 = sshll.u32 [#allocation5], 4
          %s148 = int_to_ptr.vmem [resolvable:$true] %s147
          %153 = dma.hbm_to_vmem [thread:$0]  %s1, 512, %s148, [#allocation6], 128, 128, 8
        $region16: #{tpu_custom_call.1} parent=11 // pred_fallthru
          _
        // Predicated region
        $region17: #{tpu_custom_call.1} parent=11 // pred_check
          %p154 = pneg %p98
        $region18: #{tpu_custom_call.1} parent=11 // pred_check_branch
          %156 = sbr.rel (%p154) target = $region20
        $region19: #{tpu_custom_call.1} parent=11 // pred_region
          _
        $region20: #{tpu_custom_call.1} parent=11 // pred_fallthru
          _
      $region12: #{tpu_custom_call.1} parent=5 // pred_fallthru
        _
      %p157 = scmp.lt.s32.totalorder %s16, 2
      // Predicated region
      $region21: #{tpu_custom_call.1} parent=5 // pred_check
        %p158 = pneg %p157
      $region22: #{tpu_custom_call.1} parent=5 // pred_check_branch
        %160 = sbr.rel (%p158) target = $region24
      $region23: #{tpu_custom_call.1} parent=5 // pred_region
        // Predicated region
        $region25: #{tpu_custom_call.1} parent=23 // pred_check
          %p161 = pneg %p50
        $region26: #{tpu_custom_call.1} parent=23 // pred_check_branch
          %163 = sbr.rel (%p161) target = $region28
        $region27: #{tpu_custom_call.1} parent=23 // pred_region
          %s164 = sand.u32 %s40, 1
          %s165 = scalar_lea.sflag [#allocation3], %s164
          %s166 = sand.u32 %s40, 1
          %s167 = smul.addr %s166, 128
          %s168 = scalar_lea.vmem [#allocation2], %s167
          %s169 = smul.u32 2, %s24
          %s171 = ssub.s32 2048, 2048
          %172 = vsyncadd %s165, %s171
          %s173 = smul.addr %s23, 16
          %s174 = sadd.s32 %s169, %s173
          %s175 = smul.addr %s174, 128
          %s176 = scalar_lea.hbm %s0, %s175
          %s177 = sshll.u32 %s168, 4
          %s178 = int_to_ptr.vmem [resolvable:$true] %s177
          %183 = dma.hbm_to_vmem [thread:$0]  %s176, 2048, %s178, %s165, 256, 256, 16
        $region28: #{tpu_custom_call.1} parent=23 // pred_fallthru
          _
      $region24: #{tpu_custom_call.1} parent=5 // pred_fallthru
        _
      %p184 = scmp.le.s32.totalorder 1, %s16
      %p185 = scmp.lt.s32.totalorder %s16, 3
      %p186 = pnand %p184, %p185
      %p187 = pneg %p186
      // Predicated region
      $region29: #{tpu_custom_call.1} parent=5 // pred_check
        _
      $region30: #{tpu_custom_call.1} parent=5 // pred_check_branch
        %189 = sbr.rel (%p186) target = $region32
      $region31: #{tpu_custom_call.1} parent=5 // pred_region
        %s190 = ssub.s32 %s16, 1
        %s191 = sand.u32 %s43, 1
        %s192 = scalar_lea.sflag [#allocation3], %s191
        %s193 = sand.u32 %s43, 1
        %s194 = smul.addr %s193, 128
        %s195 = scalar_lea.vmem [#allocation2], %s194
        // Predicated region
        $region33: #{tpu_custom_call.1} parent=31 // pred_check
          %p196 = pneg %p56
        $region34: #{tpu_custom_call.1} parent=31 // pred_check_branch
          %198 = sbr.rel (%p196) target = $region36
        $region35: #{tpu_custom_call.1} parent=31 // pred_region
          %199 = dma.done %s192, 2048
        $region36: #{tpu_custom_call.1} parent=31 // pred_fallthru
          _
        // Predicated region
        $region37: #{tpu_custom_call.1} parent=31 // pred_check
          %p200 = pneg %p77
        $region38: #{tpu_custom_call.1} parent=31 // pred_check_branch
          %202 = sbr.rel (%p200) target = $region40
        $region39: #{tpu_custom_call.1} parent=31 // pred_region
          %203 = dma.done [#allocation6], 512
        $region40: #{tpu_custom_call.1} parent=31 // pred_fallthru
          _
        %s204 = sand.u32 %s43, 1
        %s205 = scalar_lea.sflag [#allocation3], %s204
        %s206 = sand.u32 %s43, 1
        %s207 = smul.addr %s206, 128
        %s208 = scalar_lea.vmem [#allocation2], %s207
        %p209 = pneg %p56
        %p210 = pneg %p53
        %p211 = pneg %p77
        %p212 = pneg %p74
        %p213 = pneg %p98
        %p214 = pneg %p95
        %p215 = pneg %p126
        %p216 = pneg %p123
        %s217 = sand.u32 %s113, 1
        %s218 = scalar_lea.sflag [#allocation4], %s217
        %s219 = sand.u32 %s113, 1
        %s220 = smul.addr %s219, 64
        %s221 = scalar_lea.vmem [#allocation7], %s220
        %s222 = smul.u32 2, %s26
        %s223 = smul.u32 2, %s26
        %v224 = vld [vmem:[%s2] sm:$0xff]
        %v225 = vld [vmem:[#allocation5] sm:$0xff]
        %v226 = vld [vmem:[%s195] sm:$0xff]
        %v227 = vld [vmem:[%s195 + $0x8] sm:$0xff]
        %v228 = vld [vmem:[%s195 + $0x10] sm:$0xff]
        %v229 = vld [vmem:[%s195 + $0x18] sm:$0xff]
        %231 = vset.pattern.permute.xlu0 0
        %232 = vperm.xlu0 %231, %v224
        %v233 = vpop.permute.xlu0 %232
        %vm235 = vcmask 130048
        %v237 = vsel %vm235, %v225, 0
        %239 = vmatprep.subr.mxu0 %v227
        %240 = vmatpush1.msra.mxu0 %v226
        %241 = vmatprep.subr.mxu0 %v229
        %242 = vmatpush1.msra.mxu0 %v228
        %243 = vmatprep.subr.mxu0 0.0
        %244 = vmatpush1.msra.mxu0 0.0
        %245 = vmatprep.subr.mxu0 0.0
        %246 = vmatpush1.msra.mxu0 0.0
        %247 = vmatprep.subr.mxu0 0.0
        %248 = vmatpush1.msra.mxu0 0.0
        %249 = vmatprep.subr.mxu0 0.0
        %250 = vmatpush1.msra.mxu0 0.0
        %251 = vmatprep.subr.mxu0 0.0
        %252 = vmatpush1.msra.mxu0 0.0
        %253 = vmatprep.subr.mxu0 0.0
        %254 = vmatpush1.msra.mxu0 0.0
        %255 = vmatprep.subr.mxu0 0.0
        %256 = vmatpush1.msra.mxu0 0.0
        %257 = vmatprep.subr.mxu0 0.0
        %258 = vmatpush1.msra.mxu0 0.0
        %259 = vmatprep.subr.mxu0 0.0
        %260 = vmatpush1.msra.mxu0 0.0
        %261 = vmatprep.subr.mxu0 0.0
        %262 = vmatpush1.msra.mxu0 0.0
        %263 = vmatprep.subr.mxu0 0.0
        %264 = vmatpush1.msra.mxu0 0.0
        %265 = vmatprep.subr.mxu0 0.0
        %266 = vmatpush1.msra.mxu0 0.0
        %267 = vmatprep.subr.mxu0 0.0
        %268 = vmatpush1.msra.mxu0 0.0
        %269 = vmatprep.subr.mxu0 0.0
        %270 = vmatpush1.msra.mxu0 0.0
        %271 = vmatprep.subr.mxu0 0.0
        %272 = vmatpush1.msra.mxu0 0.0
        %273 = vmatprep.subr.mxu0 0.0
        %274 = vmatpush1.msra.mxu0 0.0
        %275 = vmatprep.subr.mxu0 0.0
        %276 = vmatpush1.msra.mxu0 0.0
        %277 = vmatprep.subr.mxu0 0.0
        %278 = vmatpush1.msra.mxu0 0.0
        %279 = vmatprep.subr.mxu0 0.0
        %280 = vmatpush1.msra.mxu0 0.0
        %281 = vmatprep.subr.mxu0 0.0
        %282 = vmatpush1.msra.mxu0 0.0
        %283 = vmatprep.subr.mxu0 0.0
        %284 = vmatpush1.msra.mxu0 0.0
        %285 = vmatprep.subr.mxu0 0.0
        %286 = vmatpush1.msra.mxu0 0.0
        %287 = vmatprep.subr.mxu0 0.0
        %288 = vmatpush1.msra.mxu0 0.0
        %289 = vmatprep.subr.mxu0 0.0
        %290 = vmatpush1.msra.mxu0 0.0
        %291 = vmatprep.subr.mxu0 0.0
        %292 = vmatpush1.msra.mxu0 0.0
        %293 = vmatprep.subr.mxu0 0.0
        %294 = vmatpush1.msra.mxu0 0.0
        %295 = vmatprep.subr.mxu0 0.0
        %296 = vmatpush1.msra.mxu0 0.0
        %297 = vmatprep.subr.mxu0 0.0
        %298 = vmatpush1.msra.mxu0 0.0
        %299 = vmatprep.subr.mxu0 0.0
        %300 = vmatpush1.msra.mxu0 0.0
        %301 = vmatprep.subr.mxu0 0.0
        %302 = vmatpush1.msra.mxu0 0.0
        %303 = vmatprep.mubr.f32.mxu0 0.0
        %304 = vmatmul.mubr.f32.gmra.mrb[0].mxu0 %v237
        %v305 = vpop.f32.mrb[0].mxu0
        %v306 = vadd.f32 %v233, %v305
        %v307 = vpop.f32.mrb[0].mxu0
        %v308 = vadd.f32 %v233, %v307
        %309 = vdwg.mxu0
        %310 = vst [vmem:[%s221] sm:$0xff] %v306
        %311 = vst [vmem:[%s221 + $0x8] sm:$0xff] %v308
        %s312 = scalar_lea.vmem [#allocation5], 8
        %v313 = vld [vmem:[%s312] sm:$0xff]
        %s314 = scalar_lea.vmem %s195, 32 [#allocation2]
        %v315 = vld [vmem:[%s314] sm:$0xff]
        %v316 = vld [vmem:[%s314 + $0x8] sm:$0xff]
        %v317 = vld [vmem:[%s314 + $0x10] sm:$0xff]
        %v318 = vld [vmem:[%s314 + $0x18] sm:$0xff]
        %v320 = vsel %vm235, %v313, 0
        %322 = vmatprep.subr.mxu0 %v316
        %323 = vmatpush1.msra.mxu0 %v315
        %324 = vmatprep.subr.mxu0 %v318
        %325 = vmatpush1.msra.mxu0 %v317
        %326 = vmatprep.subr.mxu0 0.0
        %327 = vmatpush1.msra.mxu0 0.0
        %328 = vmatprep.subr.mxu0 0.0
        %329 = vmatpush1.msra.mxu0 0.0
        %330 = vmatprep.subr.mxu0 0.0
        %331 = vmatpush1.msra.mxu0 0.0
        %332 = vmatprep.subr.mxu0 0.0
        %333 = vmatpush1.msra.mxu0 0.0
        %334 = vmatprep.subr.mxu0 0.0
        %335 = vmatpush1.msra.mxu0 0.0
        %336 = vmatprep.subr.mxu0 0.0
        %337 = vmatpush1.msra.mxu0 0.0
        %338 = vmatprep.subr.mxu0 0.0
        %339 = vmatpush1.msra.mxu0 0.0
        %340 = vmatprep.subr.mxu0 0.0
        %341 = vmatpush1.msra.mxu0 0.0
        %342 = vmatprep.subr.mxu0 0.0
        %343 = vmatpush1.msra.mxu0 0.0
        %344 = vmatprep.subr.mxu0 0.0
        %345 = vmatpush1.msra.mxu0 0.0
        %346 = vmatprep.subr.mxu0 0.0
        %347 = vmatpush1.msra.mxu0 0.0
        %348 = vmatprep.subr.mxu0 0.0
        %349 = vmatpush1.msra.mxu0 0.0
        %350 = vmatprep.subr.mxu0 0.0
        %351 = vmatpush1.msra.mxu0 0.0
        %352 = vmatprep.subr.mxu0 0.0
        %353 = vmatpush1.msra.mxu0 0.0
        %354 = vmatprep.subr.mxu0 0.0
        %355 = vmatpush1.msra.mxu0 0.0
        %356 = vmatprep.subr.mxu0 0.0
        %357 = vmatpush1.msra.mxu0 0.0
        %358 = vmatprep.subr.mxu0 0.0
        %359 = vmatpush1.msra.mxu0 0.0
        %360 = vmatprep.subr.mxu0 0.0
        %361 = vmatpush1.msra.mxu0 0.0
        %362 = vmatprep.subr.mxu0 0.0
        %363 = vmatpush1.msra.mxu0 0.0
        %364 = vmatprep.subr.mxu0 0.0
        %365 = vmatpush1.msra.mxu0 0.0
        %366 = vmatprep.subr.mxu0 0.0
        %367 = vmatpush1.msra.mxu0 0.0
        %368 = vmatprep.subr.mxu0 0.0
        %369 = vmatpush1.msra.mxu0 0.0
        %370 = vmatprep.subr.mxu0 0.0
        %371 = vmatpush1.msra.mxu0 0.0
        %372 = vmatprep.subr.mxu0 0.0
        %373 = vmatpush1.msra.mxu0 0.0
        %374 = vmatprep.subr.mxu0 0.0
        %375 = vmatpush1.msra.mxu0 0.0
        %376 = vmatprep.subr.mxu0 0.0
        %377 = vmatpush1.msra.mxu0 0.0
        %378 = vmatprep.subr.mxu0 0.0
        %379 = vmatpush1.msra.mxu0 0.0
        %380 = vmatprep.subr.mxu0 0.0
        %381 = vmatpush1.msra.mxu0 0.0
        %382 = vmatprep.subr.mxu0 0.0
        %383 = vmatpush1.msra.mxu0 0.0
        %384 = vmatprep.subr.mxu0 0.0
        %385 = vmatpush1.msra.mxu0 0.0
        %386 = vmatprep.mubr.f32.mxu0 0.0
        %387 = vmatmul.mubr.f32.gmra.mrb[0].mxu0 %v320
        %v388 = vpop.f32.mrb[0].mxu0
        %v389 = vadd.f32 %v233, %v388
        %v390 = vpop.f32.mrb[0].mxu0
        %v391 = vadd.f32 %v233, %v390
        %392 = vdwg.mxu0
        %s393 = scalar_lea.vmem %s221, 16 [#allocation7]
        %394 = vst [vmem:[%s393] sm:$0xff] %v389
        %395 = vst [vmem:[%s393 + $0x8] sm:$0xff] %v391
        %s396 = scalar_lea.vmem [#allocation5], 16
        %v397 = vld [vmem:[%s396] sm:$0xff]
        %s398 = scalar_lea.vmem %s195, 64 [#allocation2]
        %v399 = vld [vmem:[%s398] sm:$0xff]
        %v400 = vld [vmem:[%s398 + $0x8] sm:$0xff]
        %v401 = vld [vmem:[%s398 + $0x10] sm:$0xff]
        %v402 = vld [vmem:[%s398 + $0x18] sm:$0xff]
        %v404 = vsel %vm235, %v397, 0
        %406 = vmatprep.subr.mxu0 %v400
        %407 = vmatpush1.msra.mxu0 %v399
        %408 = vmatprep.subr.mxu0 %v402
        %409 = vmatpush1.msra.mxu0 %v401
        %410 = vmatprep.subr.mxu0 0.0
        %411 = vmatpush1.msra.mxu0 0.0
        %412 = vmatprep.subr.mxu0 0.0
        %413 = vmatpush1.msra.mxu0 0.0
        %414 = vmatprep.subr.mxu0 0.0
        %415 = vmatpush1.msra.mxu0 0.0
        %416 = vmatprep.subr.mxu0 0.0
        %417 = vmatpush1.msra.mxu0 0.0
        %418 = vmatprep.subr.mxu0 0.0
        %419 = vmatpush1.msra.mxu0 0.0
        %420 = vmatprep.subr.mxu0 0.0
        %421 = vmatpush1.msra.mxu0 0.0
        %422 = vmatprep.subr.mxu0 0.0
        %423 = vmatpush1.msra.mxu0 0.0
        %424 = vmatprep.subr.mxu0 0.0
        %425 = vmatpush1.msra.mxu0 0.0
        %426 = vmatprep.subr.mxu0 0.0
        %427 = vmatpush1.msra.mxu0 0.0
        %428 = vmatprep.subr.mxu0 0.0
        %429 = vmatpush1.msra.mxu0 0.0
        %430 = vmatprep.subr.mxu0 0.0
        %431 = vmatpush1.msra.mxu0 0.0
        %432 = vmatprep.subr.mxu0 0.0
        %433 = vmatpush1.msra.mxu0 0.0
        %434 = vmatprep.subr.mxu0 0.0
        %435 = vmatpush1.msra.mxu0 0.0
        %436 = vmatprep.subr.mxu0 0.0
        %437 = vmatpush1.msra.mxu0 0.0
        %438 = vmatprep.subr.mxu0 0.0
        %439 = vmatpush1.msra.mxu0 0.0
        %440 = vmatprep.subr.mxu0 0.0
        %441 = vmatpush1.msra.mxu0 0.0
        %442 = vmatprep.subr.mxu0 0.0
        %443 = vmatpush1.msra.mxu0 0.0
        %444 = vmatprep.subr.mxu0 0.0
        %445 = vmatpush1.msra.mxu0 0.0
        %446 = vmatprep.subr.mxu0 0.0
        %447 = vmatpush1.msra.mxu0 0.0
        %448 = vmatprep.subr.mxu0 0.0
        %449 = vmatpush1.msra.mxu0 0.0
        %450 = vmatprep.subr.mxu0 0.0
        %451 = vmatpush1.msra.mxu0 0.0
        %452 = vmatprep.subr.mxu0 0.0
        %453 = vmatpush1.msra.mxu0 0.0
        %454 = vmatprep.subr.mxu0 0.0
        %455 = vmatpush1.msra.mxu0 0.0
        %456 = vmatprep.subr.mxu0 0.0
        %457 = vmatpush1.msra.mxu0 0.0
        %458 = vmatprep.subr.mxu0 0.0
        %459 = vmatpush1.msra.mxu0 0.0
        %460 = vmatprep.subr.mxu0 0.0
        %461 = vmatpush1.msra.mxu0 0.0
        %462 = vmatprep.subr.mxu0 0.0
        %463 = vmatpush1.msra.mxu0 0.0
        %464 = vmatprep.subr.mxu0 0.0
        %465 = vmatpush1.msra.mxu0 0.0
        %466 = vmatprep.subr.mxu0 0.0
        %467 = vmatpush1.msra.mxu0 0.0
        %468 = vmatprep.subr.mxu0 0.0
        %469 = vmatpush1.msra.mxu0 0.0
        %470 = vmatprep.mubr.f32.mxu0 0.0
        %471 = vmatmul.mubr.f32.gmra.mrb[0].mxu0 %v404
        %v472 = vpop.f32.mrb[0].mxu0
        %v473 = vadd.f32 %v233, %v472
        %v474 = vpop.f32.mrb[0].mxu0
        %v475 = vadd.f32 %v233, %v474
        %476 = vdwg.mxu0
        %s477 = scalar_lea.vmem %s221, 32 [#allocation7]
        %478 = vst [vmem:[%s477] sm:$0xff] %v473
        %479 = vst [vmem:[%s477 + $0x8] sm:$0xff] %v475
        %s480 = scalar_lea.vmem [#allocation5], 24
        %v481 = vld [vmem:[%s480] sm:$0xff]
        %s482 = scalar_lea.vmem %s195, 96 [#allocation2]
        %v483 = vld [vmem:[%s482] sm:$0xff]
        %v484 = vld [vmem:[%s482 + $0x8] sm:$0xff]
        %v485 = vld [vmem:[%s482 + $0x10] sm:$0xff]
        %v486 = vld [vmem:[%s482 + $0x18] sm:$0xff]
        %v488 = vsel %vm235, %v481, 0
        %490 = vmatprep.subr.mxu0 %v484
        %491 = vmatpush1.msra.mxu0 %v483
        %492 = vmatprep.subr.mxu0 %v486
        %493 = vmatpush1.msra.mxu0 %v485
        %494 = vmatprep.subr.mxu0 0.0
        %495 = vmatpush1.msra.mxu0 0.0
        %496 = vmatprep.subr.mxu0 0.0
        %497 = vmatpush1.msra.mxu0 0.0
        %498 = vmatprep.subr.mxu0 0.0
        %499 = vmatpush1.msra.mxu0 0.0
        %500 = vmatprep.subr.mxu0 0.0
        %501 = vmatpush1.msra.mxu0 0.0
        %502 = vmatprep.subr.mxu0 0.0
        %503 = vmatpush1.msra.mxu0 0.0
        %504 = vmatprep.subr.mxu0 0.0
        %505 = vmatpush1.msra.mxu0 0.0
        %506 = vmatprep.subr.mxu0 0.0
        %507 = vmatpush1.msra.mxu0 0.0
        %508 = vmatprep.subr.mxu0 0.0
        %509 = vmatpush1.msra.mxu0 0.0
        %510 = vmatprep.subr.mxu0 0.0
        %511 = vmatpush1.msra.mxu0 0.0
        %512 = vmatprep.subr.mxu0 0.0
        %513 = vmatpush1.msra.mxu0 0.0
        %514 = vmatprep.subr.mxu0 0.0
        %515 = vmatpush1.msra.mxu0 0.0
        %516 = vmatprep.subr.mxu0 0.0
        %517 = vmatpush1.msra.mxu0 0.0
        %518 = vmatprep.subr.mxu0 0.0
        %519 = vmatpush1.msra.mxu0 0.0
        %520 = vmatprep.subr.mxu0 0.0
        %521 = vmatpush1.msra.mxu0 0.0
        %522 = vmatprep.subr.mxu0 0.0
        %523 = vmatpush1.msra.mxu0 0.0
        %524 = vmatprep.subr.mxu0 0.0
        %525 = vmatpush1.msra.mxu0 0.0
        %526 = vmatprep.subr.mxu0 0.0
        %527 = vmatpush1.msra.mxu0 0.0
        %528 = vmatprep.subr.mxu0 0.0
        %529 = vmatpush1.msra.mxu0 0.0
        %530 = vmatprep.subr.mxu0 0.0
        %531 = vmatpush1.msra.mxu0 0.0
        %532 = vmatprep.subr.mxu0 0.0
        %533 = vmatpush1.msra.mxu0 0.0
        %534 = vmatprep.subr.mxu0 0.0
        %535 = vmatpush1.msra.mxu0 0.0
        %536 = vmatprep.subr.mxu0 0.0
        %537 = vmatpush1.msra.mxu0 0.0
        %538 = vmatprep.subr.mxu0 0.0
        %539 = vmatpush1.msra.mxu0 0.0
        %540 = vmatprep.subr.mxu0 0.0
        %541 = vmatpush1.msra.mxu0 0.0
        %542 = vmatprep.subr.mxu0 0.0
        %543 = vmatpush1.msra.mxu0 0.0
        %544 = vmatprep.subr.mxu0 0.0
        %545 = vmatpush1.msra.mxu0 0.0
        %546 = vmatprep.subr.mxu0 0.0
        %547 = vmatpush1.msra.mxu0 0.0
        %548 = vmatprep.subr.mxu0 0.0
        %549 = vmatpush1.msra.mxu0 0.0
        %550 = vmatprep.subr.mxu0 0.0
        %551 = vmatpush1.msra.mxu0 0.0
        %552 = vmatprep.subr.mxu0 0.0
        %553 = vmatpush1.msra.mxu0 0.0
        %554 = vmatprep.mubr.f32.mxu0 0.0
        %555 = vmatmul.mubr.f32.gmra.mrb[0].mxu0 %v488
        %v556 = vpop.f32.mrb[0].mxu0
        %v557 = vadd.f32 %v233, %v556
        %v558 = vpop.f32.mrb[0].mxu0
        %v559 = vadd.f32 %v233, %v558
        %560 = vdwg.mxu0
        %s561 = scalar_lea.vmem %s221, 48 [#allocation7]
        %562 = vst [vmem:[%s561] sm:$0xff] %v557
        %563 = vst [vmem:[%s561 + $0x8] sm:$0xff] %v559
        %s564 = sand.u32 %s113, 1
        %s565 = scalar_lea.sflag [#allocation4], %s564
        %s566 = sand.u32 %s113, 1
        %s567 = smul.addr %s566, 64
        %s568 = scalar_lea.vmem [#allocation7], %s567
        // Predicated region
        $region41: #{tpu_custom_call.1} parent=31 // pred_check
          %p569 = pneg %p123
        $region42: #{tpu_custom_call.1} parent=31 // pred_check_branch
          %571 = sbr.rel (%p569) target = $region44
        $region43: #{tpu_custom_call.1} parent=31 // pred_region
          %s572 = smul.u32 2, %s26
          %s574 = ssub.s32 1024, 1024
          %575 = vsyncadd %s565, %s574
          %s576 = smul.addr %s25, 8
          %s577 = sadd.s32 %s572, %s576
          %s578 = smul.addr %s577, 128
          %s579 = scalar_lea.hbm %s3, %s578
          %s580 = sshll.u32 %s568, 4
          %s581 = int_to_ptr.vmem [resolvable:$true] %s580
          %586 = dma.vmem_to_hbm [thread:$0]  %s581, 1024, %s579, %s565, 256, 256, 16
        $region44: #{tpu_custom_call.1} parent=31 // pred_fallthru
          _
      $region32: #{tpu_custom_call.1} parent=5 // pred_fallthru
        _
      %p587 = scmp.le.s32.totalorder 2, %s16
      // Predicated region
      $region45: #{tpu_custom_call.1} parent=5 // pred_check
        %p588 = pneg %p587
      $region46: #{tpu_custom_call.1} parent=5 // pred_check_branch
        %590 = sbr.rel (%p588) target = $region48
      $region47: #{tpu_custom_call.1} parent=5 // pred_region
        %s591 = ssub.s32 %s16, 2
        // Predicated region
        $region49: #{tpu_custom_call.1} parent=47 // pred_check
          %p592 = pneg %p129
        $region50: #{tpu_custom_call.1} parent=47 // pred_check_branch
          %594 = sbr.rel (%p592) target = $region52
        $region51: #{tpu_custom_call.1} parent=47 // pred_region
          %s595 = sand.u32 %s114, 1
          %s596 = scalar_lea.sflag [#allocation4], %s595
          %s597 = sand.u32 %s114, 1
          %s598 = smul.addr %s597, 64
          %s599 = scalar_lea.vmem [#allocation7], %s598
          %600 = dma.done %s596, 1024
        $region52: #{tpu_custom_call.1} parent=47 // pred_fallthru
          _
      $region48: #{tpu_custom_call.1} parent=5 // pred_fallthru
        _
    $region6: #{tpu_custom_call.1} parent=1 // loop_footer
      %s20 = sadd.s32 1, %s16
    $region7: #{tpu_custom_call.1} parent=1 // loop_footer_branch
      %15 = sbr.rel target = $region3
    $region8: #{tpu_custom_call.1} parent=1 // loop_exit
      _
    %601 = vsyncpa [#allocation3], 1
    %s602 = scalar_lea.sflag [#allocation3], 1
    %603 = vsyncpa %s602, 1
    %604 = vsyncpa [#allocation6], 1
    %605 = vsyncpa [#allocation4], 1
    %s606 = scalar_lea.sflag [#allocation4], 1
    %607 = vsyncpa %s606, 1

</llo_original>
